<compile_context>
chip_gen: v7x
topology: tpu7x:2x2x1
jax: 0.10.0
libtpu: 0.0.40
codegen_flags: <defaults>
</compile_context>

<pallas_src>
import jax
import jax.numpy as jnp
from jax.experimental import pallas as pl
from jax.experimental.pallas import tpu as pltpu


_LANE = 128


def _round_up(n, m):
    return ((n + m - 1) // m) * m


def _mlp_kernel(x_ref, w1_ref, b1_ref, w2_ref, b2_ref, o_ref):
    # In-kernel activation cast (f32 HBM -> bf16 vregs) for the MXU; the VPU cast
    # hides under DMA/MXU slack on v5e/v6e/v7x.
    x = x_ref[...].astype(w1_ref.dtype)
    # Hidden layer: bf16 x bf16 MXU matmul, f32 accumulation, f32 bias + tanh (EUP).
    h = jnp.tanh(
        jnp.dot(x, w1_ref[...], preferred_element_type=jnp.float32) + b1_ref[...]
    )
    # Output layer: cast activations back to bf16 for the MXU, accumulate f32,
    # tanh in f32, store bf16 (lane-dense padded output slab).
    o_ref[...] = jnp.tanh(
        jnp.dot(h.astype(w2_ref.dtype), w2_ref[...],
                preferred_element_type=jnp.float32)
        + b2_ref[...]
    ).astype(o_ref.dtype)


def prepare_params(w1, b1, w2, b2, param_dtype=jnp.bfloat16):
    """One-time parameter preparation (keeps the per-call path free of transposes).

    Inputs are in PyTorch nn.Linear layout:
      w1: (nb_hiddens, nb_inputs), b1: (nb_hiddens,)
      w2: (nb_outputs, nb_hiddens), b2: (nb_outputs,)
    Weights are transposed to (in, out), zero-padded so hidden/output feature
    dims are multiples of 128 lanes, and cast to bf16.  Biases stay f32 as
    (1, padded) rows.  Zero padding is exact: padded hidden columns get
    tanh(0)=0 and multiply zero rows of W2; padded output columns are either
    sliced off or ignored by the consumer.
    """
    nb_hiddens, nb_inputs = w1.shape
    nb_outputs, nb_hiddens2 = w2.shape
    assert nb_hiddens2 == nb_hiddens

    h_pad = _round_up(nb_hiddens, _LANE)
    o_pad = _round_up(nb_outputs, _LANE)

    w1_t = jnp.zeros((nb_inputs, h_pad), jnp.float32)
    w1_t = w1_t.at[:, :nb_hiddens].set(jnp.asarray(w1, jnp.float32).T)
    w2_t = jnp.zeros((h_pad, o_pad), jnp.float32)
    w2_t = w2_t.at[:nb_hiddens, :nb_outputs].set(jnp.asarray(w2, jnp.float32).T)
    b1_r = jnp.zeros((1, h_pad), jnp.float32)
    b1_r = b1_r.at[0, :nb_hiddens].set(jnp.asarray(b1, jnp.float32))
    b2_r = jnp.zeros((1, o_pad), jnp.float32)
    b2_r = b2_r.at[0, :nb_outputs].set(jnp.asarray(b2, jnp.float32))

    return {
        "w1": w1_t.astype(param_dtype),
        "b1": b1_r,
        "w2": w2_t.astype(param_dtype),
        "b2": b2_r,
        "nb_inputs": nb_inputs,
        "nb_outputs": nb_outputs,
    }


def neural_network_forward(x, params, *, tm=1024, return_padded=False):
    """x: (B, ...) float tensor (flattened like nn.Flatten).
    params: output of prepare_params().

    Returns (B, nb_outputs) float (bf16 kernel output) by default.  Pass
    return_padded=True to get the lane-dense (B, o_pad) slab and avoid the
    extra slice pass (index [:, :nb_outputs] lazily at the consumer)."""
    w1 = params["w1"]
    b1 = params["b1"]
    w2 = params["w2"]
    b2 = params["b2"]
    nb_outputs = params["nb_outputs"]

    B = x.shape[0]
    # nn.Flatten().  NOTE: no dtype cast here — the bf16 cast happens in-kernel.
    x2d = jnp.asarray(x, jnp.float32).reshape(B, -1)
    nb_inputs = x2d.shape[1]
    assert nb_inputs == params["nb_inputs"]
    h_pad = w1.shape[1]
    o_pad = w2.shape[1]

    # Batch tiling:
    #   * B <= 64: single block (per-step overhead ~0.35 us dominates otherwise).
    #   * B  > 64: at least 2 grid steps so dimension_semantics=("parallel",)
    #     can shard the batch across v7x's two TensorCores, capped at tm rows.
    # Weights/biases are VMEM-resident across steps (index_map -> (0,0)).
    if B <= 64:
        tm_eff = B
    else:
        tm_eff = min(tm, _round_up(pl.cdiv(B, 2), 8))
    grid = (pl.cdiv(B, tm_eff),)

    # Explicit VMEM budget (double-buffered x/out tiles + resident params).
    # Must stay well under v7x's 64 MiB/TC; 32 MiB is a sane ceiling everywhere.
    vmem_needed = (
        2 * tm_eff * nb_inputs * 4            # x tile (f32), double-buffered
        + 2 * tm_eff * o_pad * 2              # out tile (bf16), double-buffered
        + 2 * (nb_inputs * h_pad + h_pad * o_pad) * 2   # W1/W2 (bf16), 2 bufs
        + 2 * (h_pad + o_pad) * 4             # biases (f32), 2 bufs
    )
    vmem_limit = 32 * 1024 * 1024
    assert vmem_needed < vmem_limit, (
        f"VMEM budget exceeded: need {vmem_needed} bytes; shrink tm or layer dims"
    )

    flops = 2 * B * (nb_inputs * h_pad + h_pad * o_pad)
    transcendentals = B * (h_pad + o_pad)
    bytes_accessed = (
        x2d.size * 4                                      # f32 activations in
        + w1.size * w1.dtype.itemsize + b1.size * 4
        + w2.size * w2.dtype.itemsize + b2.size * 4
        + B * o_pad * 2                                   # bf16 padded output
    )

    out_padded = pl.pallas_call(
        _mlp_kernel,
        out_shape=jax.ShapeDtypeStruct((B, o_pad), jnp.bfloat16),
        grid=grid,
        in_specs=[
            pl.BlockSpec((tm_eff, nb_inputs), lambda i: (i, 0)),   # batch-tiled x
            pl.BlockSpec((nb_inputs, h_pad), lambda i: (0, 0)),    # resident W1
            pl.BlockSpec((1, h_pad), lambda i: (0, 0)),            # resident b1
            pl.BlockSpec((h_pad, o_pad), lambda i: (0, 0)),        # resident W2
            pl.BlockSpec((1, o_pad), lambda i: (0, 0)),            # resident b2
        ],
        out_specs=pl.BlockSpec((tm_eff, o_pad), lambda i: (i, 0)),
        compiler_params=pltpu.CompilerParams(
            dimension_semantics=("parallel",),      # megacore split on v7x
            vmem_limit_bytes=vmem_limit,
        ),
        cost_estimate=pl.CostEstimate(
            flops=flops,
            transcendentals=transcendentals,
            bytes_accessed=bytes_accessed,
        ),
    )(x2d, w1, b1, w2, b2)

    if return_padded:
        return out_padded
    # Keep nn.Module output semantics: (B, nb_outputs).
    return out_padded[:, :nb_outputs]


def init_params(key, nb_inputs, nb_hiddens, nb_outputs):
    """Deterministic PyTorch-style (uniform +-1/sqrt(fan_in)) initialization,
    returned in PyTorch nn.Linear layout."""
    k1, k2, k3, k4 = jax.random.split(key, 4)
    lim1 = 1.0 / jnp.sqrt(jnp.float32(nb_inputs))
    lim2 = 1.0 / jnp.sqrt(jnp.float32(nb_hiddens))
    w1 = jax.random.uniform(k1, (nb_hiddens, nb_inputs), jnp.float32, -lim1, lim1)
    b1 = jax.random.uniform(k2, (nb_hiddens,), jnp.float32, -lim1, lim1)
    w2 = jax.random.uniform(k3, (nb_outputs, nb_hiddens), jnp.float32, -lim2, lim2)
    b2 = jax.random.uniform(k4, (nb_outputs,), jnp.float32, -lim2, lim2)
    return w1, b1, w2, b2


if __name__ == "__main__":
    key = jax.random.PRNGKey(0)
    kx, kp = jax.random.split(key)

    # Small shapes consistent with the module: batch=2, input presented as
    # (2, 4, 4) -> nb_inputs=16, nb_hiddens=32, nb_outputs=8.
    batch, nb_inputs, nb_hiddens, nb_outputs = 2, 16, 32, 8
    x = jax.random.normal(kx, (batch, 4, 4), jnp.float32)

    w1, b1, w2, b2 = init_params(kp, nb_inputs, nb_hiddens, nb_outputs)

    # One-time prep (hoisted out of the per-call path).
    params = prepare_params(w1, b1, w2, b2)

    out = neural_network_forward(x, params)
    out = jax.block_until_ready(out)
    assert out.shape == (batch, nb_outputs)
    out_f32 = jnp.asarray(out, jnp.float32)

    # Reference 1: plain JAX with the SAME bf16 matmul precision; tolerance
    # loosened for the bf16 output store (~4e-3 rounding on tanh in [-1,1]).
    x2d = x.reshape(batch, -1)
    xa = x2d.astype(jnp.bfloat16).astype(jnp.float32)
    w1a = jnp.asarray(w1, jnp.float32).T.astype(jnp.bfloat16).astype(jnp.float32)
    w2a = jnp.asarray(w2, jnp.float32).T.astype(jnp.bfloat16).astype(jnp.float32)
    h_ref = jnp.tanh(xa @ w1a + b1)
    ref_bf16 = jnp.tanh(h_ref.astype(jnp.bfloat16).astype(jnp.float32) @ w2a + b2)
    assert jnp.allclose(out_f32, ref_bf16, atol=1.5e-2, rtol=1.5e-2)

    # Reference 2: exact f32 PyTorch-semantics forward -> loose match
    # (bf16 MXU / storage rounding only; negligible for a tanh controller).
    ref_f32 = jnp.tanh(jnp.tanh(x2d @ w1.T + b1) @ w2.T + b2)
    assert jnp.allclose(out_f32, ref_f32, atol=5e-2, rtol=5e-2)

    print("KERNEL_OK")
</pallas_src>

<mosaic_0001>
module attributes {stable_mosaic.version = 11 : i64} {
  func.func @_mlp_kernel(%arg0: i32, %arg1: memref<2x16xf32, #tpu.memory_space<vmem>>, %arg2: memref<16x128xbf16, #tpu.memory_space<vmem>>, %arg3: memref<1x128xf32, #tpu.memory_space<vmem>>, %arg4: memref<128x128xbf16, #tpu.memory_space<vmem>>, %arg5: memref<1x128xf32, #tpu.memory_space<vmem>>, %arg6: memref<2x128xbf16, #tpu.memory_space<vmem>>) attributes {dimension_semantics = [#tpu.dimension_semantics<parallel>], iteration_bounds = array<i64: 1>, scalar_prefetch = 0 : i64, scratch_operands = 0 : i64, tpu.core_type = #tpu.core_type<tc>, window_params = [{transform_indices = @transform_0, window_bounds = array<i64: 2, 16>}, {pipeline_mode = #tpu.pipeline_mode<synchronous>, transform_indices = @transform_1, window_bounds = array<i64: 16, 128>}, {pipeline_mode = #tpu.pipeline_mode<synchronous>, transform_indices = @transform_2, window_bounds = array<i64: 1, 128>}, {pipeline_mode = #tpu.pipeline_mode<synchronous>, transform_indices = @transform_3, window_bounds = array<i64: 128, 128>}, {pipeline_mode = #tpu.pipeline_mode<synchronous>, transform_indices = @transform_4, window_bounds = array<i64: 1, 128>}, {transform_indices = @transform_5, window_bounds = array<i64: 2, 128>}]} {
    %c0 = arith.constant 0 : index
    %c0_0 = arith.constant 0 : index
    %0 = vector.load %arg1[%c0, %c0_0] : memref<2x16xf32, #tpu.memory_space<vmem>>, vector<2x16xf32>
    %1 = arith.truncf %0 : vector<2x16xf32> to vector<2x16xbf16>
    %c0_1 = arith.constant 0 : index
    %c0_2 = arith.constant 0 : index
    %2 = vector.load %arg2[%c0_1, %c0_2] : memref<16x128xbf16, #tpu.memory_space<vmem>>, vector<16x128xbf16>
    %cst = arith.constant dense<0.000000e+00> : vector<2x128xf32>
    %3 = tpu.matmul %1, %2, %cst {dimension_numbers = #tpu.dot_dimension_numbers<[1], [0], [0], [1], [0, 0, 1, 1], [], []>} : vector<2x16xbf16>, vector<16x128xbf16>, vector<2x128xf32> -> vector<2x128xf32>
    %c0_3 = arith.constant 0 : index
    %c0_4 = arith.constant 0 : index
    %4 = vector.load %arg3[%c0_3, %c0_4] : memref<1x128xf32, #tpu.memory_space<vmem>>, vector<1x128xf32>
    %5 = vector.broadcast %4 : vector<1x128xf32> to vector<2x128xf32>
    %6 = arith.addf %3, %5 : vector<2x128xf32>
    %7 = math.tanh %6 : vector<2x128xf32>
    %8 = arith.truncf %7 : vector<2x128xf32> to vector<2x128xbf16>
    %c0_5 = arith.constant 0 : index
    %c0_6 = arith.constant 0 : index
    %9 = vector.load %arg4[%c0_5, %c0_6] : memref<128x128xbf16, #tpu.memory_space<vmem>>, vector<128x128xbf16>
    %cst_7 = arith.constant dense<0.000000e+00> : vector<2x128xf32>
    %10 = tpu.matmul %8, %9, %cst_7 {dimension_numbers = #tpu.dot_dimension_numbers<[1], [0], [0], [1], [0, 0, 1, 1], [], []>} : vector<2x128xbf16>, vector<128x128xbf16>, vector<2x128xf32> -> vector<2x128xf32>
    %c0_8 = arith.constant 0 : index
    %c0_9 = arith.constant 0 : index
    %11 = vector.load %arg5[%c0_8, %c0_9] : memref<1x128xf32, #tpu.memory_space<vmem>>, vector<1x128xf32>
    %12 = vector.broadcast %11 : vector<1x128xf32> to vector<2x128xf32>
    %13 = arith.addf %10, %12 : vector<2x128xf32>
    %14 = math.tanh %13 : vector<2x128xf32>
    %15 = arith.truncf %14 : vector<2x128xf32> to vector<2x128xbf16>
    %c0_10 = arith.constant 0 : index
    %c0_11 = arith.constant 0 : index
    %16 = vector.load %arg6[%c0_10, %c0_11] : memref<2x128xbf16, #tpu.memory_space<vmem>>, vector<2x128xbf16>
    tpu.vector_store %arg6[%c0_10, %c0_11], %15 {strides = array<i32>} : memref<2x128xbf16, #tpu.memory_space<vmem>>, vector<2x128xbf16>,
    return
  }
  func.func @transform_0(%arg0: i32) -> (i32, i32) {
    %c0_i32 = arith.constant 0 : i32
    %c0_i32_0 = arith.constant 0 : i32
    return %arg0, %c0_i32 : i32, i32
  }
  func.func @transform_1(%arg0: i32) -> (i32, i32) {
    %c0_i32 = arith.constant 0 : i32
    %c0_i32_0 = arith.constant 0 : i32
    %c0_i32_1 = arith.constant 0 : i32
    return %c0_i32, %c0_i32_0 : i32, i32
  }
  func.func @transform_2(%arg0: i32) -> (i32, i32) {
    %c0_i32 = arith.constant 0 : i32
    %c0_i32_0 = arith.constant 0 : i32
    %c0_i32_1 = arith.constant 0 : i32
    return %c0_i32, %c0_i32_0 : i32, i32
  }
  func.func @transform_3(%arg0: i32) -> (i32, i32) {
    %c0_i32 = arith.constant 0 : i32
    %c0_i32_0 = arith.constant 0 : i32
    %c0_i32_1 = arith.constant 0 : i32
    return %c0_i32, %c0_i32_0 : i32, i32
  }
  func.func @transform_4(%arg0: i32) -> (i32, i32) {
    %c0_i32 = arith.constant 0 : i32
    %c0_i32_0 = arith.constant 0 : i32
    %c0_i32_1 = arith.constant 0 : i32
    return %c0_i32, %c0_i32_0 : i32, i32
  }
  func.func @transform_5(%arg0: i32) -> (i32, i32) {
    %c0_i32 = arith.constant 0 : i32
    %c0_i32_0 = arith.constant 0 : i32
    return %arg0, %c0_i32 : i32, i32
  }
}

</mosaic_0001>

<llo_original>
// kernel: tpu_custom_call.1
$region0: #{tpu_custom_call.1}
  #allocation0 [shape = 'u32[]', space=smem, size = 0x4, offset = 0x4, fixed_abs, tag = 'smem constant byte address 0x4 - core index']
  #allocation1 [shape = 'u32[144,128]{1,0:T(1,128)}', space=vmem, size = 0x12000, scoped, tag = 'internal scratch']
  %s0 = inlined_call_operand.hbm [shape: f32[2,16], index: 0, kind: input, shape index: {}]
  %s1 = inlined_call_operand.hbm [shape: bf16[16,128], index: 1, kind: input, shape index: {}]
  %s2 = inlined_call_operand.vmem [shape: f32[1,128], index: 2, kind: input, shape index: {}]
  %s3 = inlined_call_operand.hbm [shape: bf16[128,128], index: 3, kind: input, shape index: {}]
  %s4 = inlined_call_operand.vmem [shape: f32[1,128], index: 4, kind: input, shape index: {}]
  %s5 = inlined_call_operand.hbm [shape: bf16[2,128], index: 5, kind: output, shape index: {}]
  %s6 = sld [smem:[#allocation0]]
  $region42: #{tpu_custom_call.1} parent=0
    _
  %s8 = ssub.s32 1, %s6
  %s9 = scalar_select 0, %s8, %s6
  $region1: #{tpu_custom_call.1} parent=0
    #allocation2 [shape = 'u8[1024]{0}', space=vmem, size = 0x400, scoped, tag = 'input window, operand 0, single buffered']
    #allocation3 [shape = 's32[1]{0}', space=sflag, size = 0x4, scoped, tag = 'scoped memory for tpu_custom_call.1']
    #allocation4 [shape = 's32[1]{0}', space=sflag, size = 0x4, scoped, tag = 'scoped memory for tpu_custom_call.1']
    #allocation5 [shape = 'u8[4096]{0}', space=vmem, size = 0x1000, scoped, tag = 'input window, operand 1, single buffered']
    #allocation6 [shape = 's32[1]{0}', space=sflag, size = 0x4, scoped, tag = 'scoped memory for tpu_custom_call.1']
    #allocation7 [shape = 'u8[32768]{0}', space=vmem, size = 0x8000, scoped, tag = 'input window, operand 3, single buffered']
    #allocation8 [shape = 'u8[512]{0}', space=vmem, size = 0x400, scoped, tag = 'output window, operand 0, single buffered']
    %10 = vsyncpa [#allocation3], 0
    %11 = vsyncpa [#allocation6], 0
    %12 = vsyncpa [#allocation4], 0
    // Predicated region
    $region2: #{tpu_custom_call.1} parent=1 // pred_check
      _
    $region3: #{tpu_custom_call.1} parent=1 // pred_check_branch
      %14 = sbr.rel (0) target = $region5
    $region4: #{tpu_custom_call.1} parent=1 // pred_region
      %s16 = ssub.s32 32, 32
      %17 = vsyncadd [#allocation3], %s16
      %s19 = sshll.u32 [#allocation2], 4
      %s20 = int_to_ptr.vmem [resolvable:$true] %s19
      %22 = dma.hbm_to_vmem [thread:$0]  %s0, 32, %s20, [#allocation3]
    $region5: #{tpu_custom_call.1} parent=1 // pred_fallthru
      _
    // Predicated region
    $region6: #{tpu_custom_call.1} parent=1 // pred_check
      _
    $region7: #{tpu_custom_call.1} parent=1 // pred_check_branch
      %24 = sbr.rel (0) target = $region9
    $region8: #{tpu_custom_call.1} parent=1 // pred_region
      %s26 = ssub.s32 128, 128
      %27 = vsyncadd [#allocation6], %s26
      %s28 = sshll.u32 [#allocation5], 4
      %s29 = int_to_ptr.vmem [resolvable:$true] %s28
      %34 = dma.hbm_to_vmem [thread:$0]  %s1, 128, %s29, [#allocation6], 64, 64, 4
    $region9: #{tpu_custom_call.1} parent=1 // pred_fallthru
      _
    // Predicated region
    $region10: #{tpu_custom_call.1} parent=1 // pred_check
      _
    $region11: #{tpu_custom_call.1} parent=1 // pred_check_branch
      %36 = sbr.rel (0) target = $region13
    $region12: #{tpu_custom_call.1} parent=1 // pred_region
      _
    $region13: #{tpu_custom_call.1} parent=1 // pred_fallthru
      _
    // Predicated region
    $region14: #{tpu_custom_call.1} parent=1 // pred_check
      _
    $region15: #{tpu_custom_call.1} parent=1 // pred_check_branch
      %38 = sbr.rel (0) target = $region17
    $region16: #{tpu_custom_call.1} parent=1 // pred_region
      %s40 = ssub.s32 1024, 1024
      %41 = vsyncadd [#allocation6], %s40
      %s42 = sshll.u32 [#allocation7], 4
      %s43 = int_to_ptr.vmem [resolvable:$true] %s42
      %48 = dma.hbm_to_vmem [thread:$0]  %s3, 1024, %s43, [#allocation6], 64, 64, 4
    $region17: #{tpu_custom_call.1} parent=1 // pred_fallthru
      _
    // Predicated region
    $region18: #{tpu_custom_call.1} parent=1 // pred_check
      _
    $region19: #{tpu_custom_call.1} parent=1 // pred_check_branch
      %50 = sbr.rel (0) target = $region21
    $region20: #{tpu_custom_call.1} parent=1 // pred_region
      _
    $region21: #{tpu_custom_call.1} parent=1 // pred_fallthru
      _
    // Predicated region
    $region22: #{tpu_custom_call.1} parent=1 // pred_check
      _
    $region23: #{tpu_custom_call.1} parent=1 // pred_check_branch
      %52 = sbr.rel (0) target = $region25
    $region24: #{tpu_custom_call.1} parent=1 // pred_region
      %53 = dma.done [#allocation3], 32
    $region25: #{tpu_custom_call.1} parent=1 // pred_fallthru
      _
    // Predicated region
    $region26: #{tpu_custom_call.1} parent=1 // pred_check
      _
    $region27: #{tpu_custom_call.1} parent=1 // pred_check_branch
      %55 = sbr.rel (0) target = $region29
    $region28: #{tpu_custom_call.1} parent=1 // pred_region
      %56 = dma.done [#allocation6], 128
    $region29: #{tpu_custom_call.1} parent=1 // pred_fallthru
      _
    // Predicated region
    $region30: #{tpu_custom_call.1} parent=1 // pred_check
      _
    $region31: #{tpu_custom_call.1} parent=1 // pred_check_branch
      %58 = sbr.rel (0) target = $region33
    $region32: #{tpu_custom_call.1} parent=1 // pred_region
      %59 = dma.done [#allocation6], 1024
    $region33: #{tpu_custom_call.1} parent=1 // pred_fallthru
      _
    %v61 = vld [vmem:[#allocation2] sm:$0x3]
    %v62 = vpack.c.bf16 %v61, %v61
    %v63 = vld [vmem:[#allocation5] sm:$0xf]
    %v64 = vld [vmem:[#allocation5 + $0x4] sm:$0xf]
    %v65 = vld [vmem:[%s2] sm:$0x1]
    %v67 = vlaneseq
    %v68 = vshrl.u32 %v67, 7
    %v69 = vsub.s32 0, %v68
    %v70 = vrot.slane %v65, %v69
    %v74 = vunpack.c.l.b16 %v63
    %v75 = vunpack.c.l.b16 %v64
    %v76 = vpack.c.b16 %v75, %v74
    %vm78 = vcmask 130048
    %v80 = vsel %vm78, %v62, 0
    %82 = vmatprep.subr.bf16.mxu0 0
    %83 = vmatpush1.bf16.msra.mxu0 %v76
    %84 = vmatprep.subr.bf16.mxu0 0
    %85 = vmatpush1.bf16.msra.mxu0 0
    %86 = vmatprep.subr.bf16.mxu0 0
    %87 = vmatpush1.bf16.msra.mxu0 0
    %88 = vmatprep.subr.bf16.mxu0 0
    %89 = vmatpush1.bf16.msra.mxu0 0
    %90 = vmatprep.subr.bf16.mxu0 0
    %91 = vmatpush1.bf16.msra.mxu0 0
    %92 = vmatprep.subr.bf16.mxu0 0
    %93 = vmatpush1.bf16.msra.mxu0 0
    %94 = vmatprep.subr.bf16.mxu0 0
    %95 = vmatpush1.bf16.msra.mxu0 0
    %96 = vmatprep.subr.bf16.mxu0 0
    %97 = vmatpush1.bf16.msra.mxu0 0
    %98 = vmatprep.subr.bf16.mxu0 0
    %99 = vmatpush1.bf16.msra.mxu0 0
    %100 = vmatprep.subr.bf16.mxu0 0
    %101 = vmatpush1.bf16.msra.mxu0 0
    %102 = vmatprep.subr.bf16.mxu0 0
    %103 = vmatpush1.bf16.msra.mxu0 0
    %104 = vmatprep.subr.bf16.mxu0 0
    %105 = vmatpush1.bf16.msra.mxu0 0
    %106 = vmatprep.subr.bf16.mxu0 0
    %107 = vmatpush1.bf16.msra.mxu0 0
    %108 = vmatprep.subr.bf16.mxu0 0
    %109 = vmatpush1.bf16.msra.mxu0 0
    %110 = vmatprep.subr.bf16.mxu0 0
    %111 = vmatpush1.bf16.msra.mxu0 0
    %112 = vmatprep.subr.bf16.mxu0 0
    %113 = vmatpush1.bf16.msra.mxu0 0
    %114 = vmatprep.mubr.bf16.mxu0 0
    %115 = vmatmul.mubr.bf16.gmra.mrb[0].mxu0 %v80
    %v116 = vpop.f32.mrb[0].mxu0
    %v117 = vadd.f32 %v70, %v116
    %v118 = vpop.f32.mrb[0].mxu0
    %v119 = vpop.f32.mrb[0].mxu0
    %v120 = vpop.f32.mrb[0].mxu0
    %121 = vdwg.mxu0
    %v122 = vtanh.pop %v117
    %v123 = vpack.c.bf16 %v122, %v122
    %v124 = vld [vmem:[#allocation7] sm:$0xf]
    %v125 = vld [vmem:[#allocation7 + $0x4] sm:$0xf]
    %v126 = vld [vmem:[#allocation7 + $0x8] sm:$0xf]
    %v127 = vld [vmem:[#allocation7 + $0xc] sm:$0xf]
    %v128 = vld [vmem:[#allocation7 + $0x10] sm:$0xf]
    %v129 = vld [vmem:[#allocation7 + $0x14] sm:$0xf]
    %v130 = vld [vmem:[#allocation7 + $0x18] sm:$0xf]
    %v131 = vld [vmem:[#allocation7 + $0x1c] sm:$0xf]
    %v132 = vld [vmem:[#allocation7 + $0x20] sm:$0xf]
    %v133 = vld [vmem:[#allocation7 + $0x24] sm:$0xf]
    %v134 = vld [vmem:[#allocation7 + $0x28] sm:$0xf]
    %v135 = vld [vmem:[#allocation7 + $0x2c] sm:$0xf]
    %v136 = vld [vmem:[#allocation7 + $0x30] sm:$0xf]
    %v137 = vld [vmem:[#allocation7 + $0x34] sm:$0xf]
    %v138 = vld [vmem:[#allocation7 + $0x38] sm:$0xf]
    %v139 = vld [vmem:[#allocation7 + $0x3c] sm:$0xf]
    %v140 = vld [vmem:[%s4] sm:$0x1]
    %v142 = vlaneseq
    %v143 = vshrl.u32 %v142, 7
    %v144 = vsub.s32 0, %v143
    %v145 = vrot.slane %v140, %v144
    %v163 = vunpack.c.l.b16 %v124
    %v164 = vunpack.c.l.b16 %v125
    %v165 = vunpack.c.l.b16 %v126
    %v166 = vunpack.c.l.b16 %v127
    %v167 = vunpack.c.l.b16 %v128
    %v168 = vunpack.c.l.b16 %v129
    %v169 = vunpack.c.l.b16 %v130
    %v170 = vunpack.c.l.b16 %v131
    %v171 = vunpack.c.l.b16 %v132
    %v172 = vunpack.c.l.b16 %v133
    %v173 = vunpack.c.l.b16 %v134
    %v174 = vunpack.c.l.b16 %v135
    %v175 = vunpack.c.l.b16 %v136
    %v176 = vunpack.c.l.b16 %v137
    %v177 = vunpack.c.l.b16 %v138
    %v178 = vunpack.c.l.b16 %v139
    %v179 = vpack.c.b16 %v164, %v163
    %v180 = vpack.c.b16 %v166, %v165
    %v181 = vpack.c.b16 %v168, %v167
    %v182 = vpack.c.b16 %v170, %v169
    %v183 = vpack.c.b16 %v172, %v171
    %v184 = vpack.c.b16 %v174, %v173
    %v185 = vpack.c.b16 %v176, %v175
    %v186 = vpack.c.b16 %v178, %v177
    %195 = vmatprep.subr.bf16.mxu0 0
    %196 = vmatpush1.bf16.msra.mxu0 %v179
    %197 = vmatprep.subr.bf16.mxu0 0
    %198 = vmatpush1.bf16.msra.mxu0 %v180
    %199 = vmatprep.subr.bf16.mxu0 0
    %200 = vmatpush1.bf16.msra.mxu0 %v181
    %201 = vmatprep.subr.bf16.mxu0 0
    %202 = vmatpush1.bf16.msra.mxu0 %v182
    %203 = vmatprep.subr.bf16.mxu0 0
    %204 = vmatpush1.bf16.msra.mxu0 %v183
    %205 = vmatprep.subr.bf16.mxu0 0
    %206 = vmatpush1.bf16.msra.mxu0 %v184
    %207 = vmatprep.subr.bf16.mxu0 0
    %208 = vmatpush1.bf16.msra.mxu0 %v185
    %209 = vmatprep.subr.bf16.mxu0 0
    %210 = vmatpush1.bf16.msra.mxu0 %v186
    %211 = vmatprep.subr.bf16.mxu0 0
    %212 = vmatpush1.bf16.msra.mxu0 0
    %213 = vmatprep.subr.bf16.mxu0 0
    %214 = vmatpush1.bf16.msra.mxu0 0
    %215 = vmatprep.subr.bf16.mxu0 0
    %216 = vmatpush1.bf16.msra.mxu0 0
    %217 = vmatprep.subr.bf16.mxu0 0
    %218 = vmatpush1.bf16.msra.mxu0 0
    %219 = vmatprep.subr.bf16.mxu0 0
    %220 = vmatpush1.bf16.msra.mxu0 0
    %221 = vmatprep.subr.bf16.mxu0 0
    %222 = vmatpush1.bf16.msra.mxu0 0
    %223 = vmatprep.subr.bf16.mxu0 0
    %224 = vmatpush1.bf16.msra.mxu0 0
    %225 = vmatprep.subr.bf16.mxu0 0
    %226 = vmatpush1.bf16.msra.mxu0 0
    %227 = vmatprep.mubr.bf16.mxu0 0
    %228 = vmatmul.mubr.bf16.gmra.mrb[0].mxu0 %v123
    %v229 = vpop.f32.mrb[0].mxu0
    %v230 = vadd.f32 %v145, %v229
    %v231 = vpop.f32.mrb[0].mxu0
    %v232 = vpop.f32.mrb[0].mxu0
    %v233 = vpop.f32.mrb[0].mxu0
    %234 = vdwg.mxu0
    %v235 = vtanh.pop %v230
    %v236 = vpack.c.bf16 %v235, %v235
    %237 = vst [vmem:[#allocation8] sm:$0x1] %v236
    // Predicated region
    $region34: #{tpu_custom_call.1} parent=1 // pred_check
      _
    $region35: #{tpu_custom_call.1} parent=1 // pred_check_branch
      %239 = sbr.rel (0) target = $region37
    $region36: #{tpu_custom_call.1} parent=1 // pred_region
      %s241 = ssub.s32 16, 16
      %242 = vsyncadd [#allocation4], %s241
      %s244 = sshll.u32 [#allocation8], 4
      %s245 = int_to_ptr.vmem [resolvable:$true] %s244
      %247 = dma.vmem_to_hbm [thread:$0]  %s245, 16, %s5, [#allocation4]
    $region37: #{tpu_custom_call.1} parent=1 // pred_fallthru
      _
    // Predicated region
    $region38: #{tpu_custom_call.1} parent=1 // pred_check
      _
    $region39: #{tpu_custom_call.1} parent=1 // pred_check_branch
      %249 = sbr.rel (0) target = $region41
    $region40: #{tpu_custom_call.1} parent=1 // pred_region
      %250 = dma.done [#allocation4], 16
    $region41: #{tpu_custom_call.1} parent=1 // pred_fallthru
      _
    %251 = vsyncpa [#allocation3], 1
    %252 = vsyncpa [#allocation6], 1
    %253 = vsyncpa [#allocation4], 1

</llo_original>
